<compile_context>
chip_gen: v5e
topology: v5e:2x2
jax: 0.10.0
libtpu: 0.0.40
codegen_flags: <defaults>
</compile_context>

<pallas_src>
import jax
import jax.numpy as jnp
from jax.experimental import pallas as pl
from jax.experimental.pallas import tpu as pltpu


def _round_up(x, m):
    return (x + m - 1) // m * m


def _mlp_kernel(x_ref, w1_ref, b1_ref, w2_ref, b2_ref, w3_ref, b3_ref,
                o_ref, h1_acc):
    k = pl.program_id(1)

    @pl.when(k == 0)
    def _init():
        h1_acc[...] = jnp.zeros_like(h1_acc)

    # Layer 1 partial product: (TB, TK) @ (TK, 512), accumulated in f32 scratch.
    h1_acc[...] += jnp.dot(x_ref[...], w1_ref[...],
                           preferred_element_type=jnp.float32)

    @pl.when(k == pl.num_programs(1) - 1)
    def _finalize():
        # Layer 1 bias + ReLU.  Dropout(0.2) is identity in eval mode.
        h1 = jnp.maximum(h1_acc[...] + b1_ref[...], 0.0)
        # Layer 2: (TB, 512) @ (512, 256) + bias -> ReLU (dropout = identity).
        h2 = jnp.dot(h1, w2_ref[...], preferred_element_type=jnp.float32)
        h2 = jnp.maximum(h2 + b2_ref[...], 0.0)
        # Layer 3 (256 -> 1) as a VPU multiply + lane reduce (avoids an N=1
        # MXU matmul); the scalar bias lives in SMEM.
        logits = jnp.sum(h2 * w3_ref[...], axis=-1) + b3_ref[0, 0]   # (TB,)
        # Lane-dense store: batch lives on the lane axis of the output slab.
        o_ref[...] = jax.nn.sigmoid(logits).astype(o_ref.dtype)[None, None, :]


def fake_news_classifier_forward(x, params, *, block_batch=None, block_k=None,
                                 compute_dtype=None):
    """Fused 3-layer MLP + sigmoid (eval-mode dropout == identity).

    x: (B, input_dim) float32
    params: dict with w1 (D,512), b1 (1,512), w2 (512,256), b2 (1,256),
            w3 (256,1), b3 (1,1)  -- weights stored as (in, out) == torch W.T.
    """
    B, D = x.shape
    H1, H2 = 512, 256

    # ---- tile selection ------------------------------------------------------
    if block_batch is None:
        # 256-1024 rows is the pipelining sweet spot; small batches use B
        # rounded to the 8-row f32 sublane granule (512 is also a multiple of
        # 128, keeping the MXU M-dim packed on v5e's 4x128^2 arrays).
        block_batch = min(512, _round_up(B, 8))
    block_batch = _round_up(block_batch, 8)
    b_pad = _round_up(B, block_batch)

    if block_k is None:
        # Keep w1 slabs <= (2048, 512) f32 == 4 MiB so they stream through VMEM.
        block_k = D if D <= 2048 else 2048
    if block_k < D:
        block_k = _round_up(block_k, 128)
        d_pad = _round_up(D, block_k)
    else:
        block_k = D
        d_pad = D
    num_b = b_pad // block_batch
    num_k = d_pad // block_k

    # ---- operand preparation (dtype / padding / layout) ----------------------
    w1, b1 = params["w1"], params["b1"]
    w2, b2 = params["w2"], params["b2"]
    w3, b3 = params["w3"], params["b3"]

    if compute_dtype is not None:
        # Optional bf16 streaming of x / weights; accumulation stays f32.
        x = x.astype(compute_dtype)
        w1 = w1.astype(compute_dtype)
        w2 = w2.astype(compute_dtype)
        w3 = w3.astype(compute_dtype)

    if (b_pad, d_pad) != (B, D):
        x = jnp.pad(x, ((0, b_pad - B), (0, d_pad - D)))
    if d_pad != D:
        w1 = jnp.pad(w1, ((0, d_pad - D), (0, 0)))

    b1 = b1.reshape(1, H1).astype(jnp.float32)
    b2 = b2.reshape(1, H2).astype(jnp.float32)
    w3_row = w3.reshape(1, H2)                       # (1, 256) lane-major row
    b3 = b3.reshape(1, 1).astype(jnp.float32)        # scalar -> SMEM

    cost = pl.CostEstimate(
        flops=2 * b_pad * (d_pad * H1 + H1 * H2 + H2),
        transcendentals=b_pad,
        bytes_accessed=int(x.size * x.dtype.itemsize
                           + w1.size * w1.dtype.itemsize
                           + w2.size * w2.dtype.itemsize
                           + w3_row.size * w3_row.dtype.itemsize
                           + (b1.size + b2.size + b3.size) * 4
                           + b_pad * 4),
    )

    out = pl.pallas_call(
        _mlp_kernel,
        out_shape=jax.ShapeDtypeStruct((num_b, 1, block_batch), jnp.float32),
        grid_spec=pltpu.PrefetchScalarGridSpec(
            num_scalar_prefetch=0,
            grid=(num_b, num_k),
            in_specs=[
                # x: streamed (block_batch, block_k) tiles.
                pl.BlockSpec((block_batch, block_k), lambda i, k: (i, k)),
                # w1: streamed (block_k, 512) slabs over the contraction dim.
                pl.BlockSpec((block_k, H1), lambda i, k: (k, 0)),
                # Small resident operands (constant block index -> fetched once).
                pl.BlockSpec((1, H1), lambda i, k: (0, 0)),      # b1
                pl.BlockSpec((H1, H2), lambda i, k: (0, 0)),     # w2
                pl.BlockSpec((1, H2), lambda i, k: (0, 0)),      # b2
                pl.BlockSpec((1, H2), lambda i, k: (0, 0)),      # w3 row
                # b3: single scalar -> SMEM, no padded VMEM tile.
                pl.BlockSpec(memory_space=pltpu.MemorySpace.SMEM),
            ],
            out_specs=pl.BlockSpec((1, 1, block_batch), lambda i, k: (i, 0, 0)),
            scratch_shapes=[pltpu.VMEM((block_batch, H1), jnp.float32)],
        ),
        compiler_params=pltpu.CompilerParams(
            dimension_semantics=("parallel", "arbitrary"),
            vmem_limit_bytes=48 * 1024 * 1024,
        ),
        cost_estimate=cost,
    )(x, w1, b1, w2, b2, w3_row, b3)

    # (num_b, 1, block_batch) lane-dense slab -> (B, 1)
    return out.reshape(b_pad)[:B].reshape(B, 1)


def init_params(key, input_dim):
    """Deterministic parameter init (PyTorch-style uniform bounds)."""
    def linear_init(k, fan_in, fan_out):
        k_w, k_b = jax.random.split(k)
        bound = 1.0 / jnp.sqrt(fan_in)
        # stored as (in, out) == PyTorch weight.T
        w = jax.random.uniform(k_w, (fan_in, fan_out), jnp.float32, -bound, bound)
        b = jax.random.uniform(k_b, (1, fan_out), jnp.float32, -bound, bound)
        return w, b

    k1, k2, k3 = jax.random.split(key, 3)
    w1, b1 = linear_init(k1, input_dim, 512)
    w2, b2 = linear_init(k2, 512, 256)
    w3, b3 = linear_init(k3, 256, 1)
    return {"w1": w1, "b1": b1, "w2": w2, "b2": b2, "w3": w3, "b3": b3}


def reference_forward(x, params):
    h1 = jnp.maximum(x @ params["w1"] + params["b1"], 0.0)
    h2 = jnp.maximum(h1 @ params["w2"] + params["b2"], 0.0)
    return jax.nn.sigmoid(h2 @ params["w3"] + params["b3"])


if __name__ == "__main__":
    key = jax.random.PRNGKey(0)
    k_x, k_p = jax.random.split(key)

    batch, input_dim = 24, 160
    x = jax.random.normal(k_x, (batch, input_dim), jnp.float32)
    params = init_params(k_p, input_dim)

    ref = reference_forward(x, params)

    # Default tiling (single batch tile, no K tiling at this small size).
    out = jax.block_until_ready(fake_news_classifier_forward(x, params))
    assert out.shape == (batch, 1)
    assert jnp.allclose(out, ref, atol=1e-5, rtol=1e-5)

    # Multi-tile path: batch tiled 3x and layer-1 contraction tiled 2x
    # (D zero-padded 160 -> 256), exercising pipelining + the accumulator.
    out_tiled = jax.block_until_ready(
        fake_news_classifier_forward(x, params, block_batch=8, block_k=128))
    assert out_tiled.shape == (batch, 1)
    assert jnp.allclose(out_tiled, ref, atol=1e-5, rtol=1e-5)

    print("KERNEL_OK")
</pallas_src>

<mosaic_0001>
module attributes {stable_mosaic.version = 11 : i64} {
  func.func @_mlp_kernel(%arg0: i32, %arg1: i32, %arg2: memref<24x160xf32, #tpu.memory_space<vmem>>, %arg3: memref<160x512xf32, #tpu.memory_space<vmem>>, %arg4: memref<1x512xf32, #tpu.memory_space<vmem>>, %arg5: memref<512x256xf32, #tpu.memory_space<vmem>>, %arg6: memref<1x256xf32, #tpu.memory_space<vmem>>, %arg7: memref<1x256xf32, #tpu.memory_space<vmem>>, %arg8: memref<1x1xf32, #tpu.memory_space<smem>>, %arg9: memref<1x1x24xf32, #tpu.memory_space<vmem>>, %arg10: memref<24x512xf32, #tpu.memory_space<vmem>>) attributes {dimension_semantics = [#tpu.dimension_semantics<parallel>, #tpu.dimension_semantics<arbitrary>], iteration_bounds = array<i64: 1, 1>, scalar_prefetch = 0 : i64, scratch_operands = 1 : i64, tpu.core_type = #tpu.core_type<tc>, window_params = [{transform_indices = @transform_0, window_bounds = array<i64: 24, 160>}, {transform_indices = @transform_1, window_bounds = array<i64: 160, 512>}, {pipeline_mode = #tpu.pipeline_mode<synchronous>, transform_indices = @transform_2, window_bounds = array<i64: 1, 512>}, {pipeline_mode = #tpu.pipeline_mode<synchronous>, transform_indices = @transform_3, window_bounds = array<i64: 512, 256>}, {pipeline_mode = #tpu.pipeline_mode<synchronous>, transform_indices = @transform_4, window_bounds = array<i64: 1, 256>}, {pipeline_mode = #tpu.pipeline_mode<synchronous>, transform_indices = @transform_5, window_bounds = array<i64: 1, 256>}, {transform_indices = @transform_6, window_bounds = array<i64: 1, 1>}, {transform_indices = @transform_7, window_bounds = array<i64: 1, 1, 24>}]} {
    %c0_i32 = arith.constant 0 : i32
    %0 = arith.cmpi eq, %arg1, %c0_i32 : i32
    %1 = arith.extui %0 : i1 to i32
    %c0_i32_0 = arith.constant 0 : i32
    %2 = arith.cmpi ne, %1, %c0_i32_0 : i32
    scf.if %2 {
      %cst_10 = arith.constant 0.000000e+00 : f32
      %12 = vector.broadcast %cst_10 : f32 to vector<24x512xf32>
      %c0_11 = arith.constant 0 : index
      %c0_12 = arith.constant 0 : index
      %13 = vector.load %arg10[%c0_11, %c0_12] : memref<24x512xf32, #tpu.memory_space<vmem>>, vector<24x512xf32>
      tpu.vector_store %arg10[%c0_11, %c0_12], %12 {strides = array<i32>} : memref<24x512xf32, #tpu.memory_space<vmem>>, vector<24x512xf32>,
    } else {
    }
    %c0 = arith.constant 0 : index
    %c0_1 = arith.constant 0 : index
    %3 = vector.load %arg10[%c0, %c0_1] : memref<24x512xf32, #tpu.memory_space<vmem>>, vector<24x512xf32>
    %c0_2 = arith.constant 0 : index
    %c0_3 = arith.constant 0 : index
    %4 = vector.load %arg2[%c0_2, %c0_3] : memref<24x160xf32, #tpu.memory_space<vmem>>, vector<24x160xf32>
    %c0_4 = arith.constant 0 : index
    %c0_5 = arith.constant 0 : index
    %5 = vector.load %arg3[%c0_4, %c0_5] : memref<160x512xf32, #tpu.memory_space<vmem>>, vector<160x512xf32>
    %cst = arith.constant dense<0.000000e+00> : vector<24x512xf32>
    %6 = tpu.matmul %4, %5, %cst {dimension_numbers = #tpu.dot_dimension_numbers<[1], [0], [0], [1], [0, 0, 1, 1], [], []>} : vector<24x160xf32>, vector<160x512xf32>, vector<24x512xf32> -> vector<24x512xf32>
    %7 = arith.addf %3, %6 : vector<24x512xf32>
    %c0_6 = arith.constant 0 : index
    %c0_7 = arith.constant 0 : index
    %8 = vector.load %arg10[%c0_6, %c0_7] : memref<24x512xf32, #tpu.memory_space<vmem>>, vector<24x512xf32>
    tpu.vector_store %arg10[%c0_6, %c0_7], %7 {strides = array<i32>} : memref<24x512xf32, #tpu.memory_space<vmem>>, vector<24x512xf32>,
    %c0_i32_8 = arith.constant 0 : i32
    %9 = arith.cmpi eq, %arg1, %c0_i32_8 : i32
    %10 = arith.extui %9 : i1 to i32
    %c0_i32_9 = arith.constant 0 : i32
    %11 = arith.cmpi ne, %10, %c0_i32_9 : i32
    scf.if %11 {
      %c0_10 = arith.constant 0 : index
      %c0_11 = arith.constant 0 : index
      %12 = vector.load %arg10[%c0_10, %c0_11] : memref<24x512xf32, #tpu.memory_space<vmem>>, vector<24x512xf32>
      %c0_12 = arith.constant 0 : index
      %c0_13 = arith.constant 0 : index
      %13 = vector.load %arg4[%c0_12, %c0_13] : memref<1x512xf32, #tpu.memory_space<vmem>>, vector<1x512xf32>
      %14 = vector.broadcast %13 : vector<1x512xf32> to vector<24x512xf32>
      %15 = arith.addf %12, %14 : vector<24x512xf32>
      %cst_14 = arith.constant 0.000000e+00 : f32
      %16 = vector.broadcast %cst_14 : f32 to vector<24x512xf32>
      %17 = arith.maximumf %15, %16 : vector<24x512xf32>
      %c0_15 = arith.constant 0 : index
      %c0_16 = arith.constant 0 : index
      %18 = vector.load %arg5[%c0_15, %c0_16] : memref<512x256xf32, #tpu.memory_space<vmem>>, vector<512x256xf32>
      %cst_17 = arith.constant dense<0.000000e+00> : vector<24x256xf32>
      %19 = tpu.matmul %17, %18, %cst_17 {dimension_numbers = #tpu.dot_dimension_numbers<[1], [0], [0], [1], [0, 0, 1, 1], [], []>} : vector<24x512xf32>, vector<512x256xf32>, vector<24x256xf32> -> vector<24x256xf32>
      %c0_18 = arith.constant 0 : index
      %c0_19 = arith.constant 0 : index
      %20 = vector.load %arg6[%c0_18, %c0_19] : memref<1x256xf32, #tpu.memory_space<vmem>>, vector<1x256xf32>
      %21 = vector.broadcast %20 : vector<1x256xf32> to vector<24x256xf32>
      %22 = arith.addf %19, %21 : vector<24x256xf32>
      %cst_20 = arith.constant 0.000000e+00 : f32
      %23 = vector.broadcast %cst_20 : f32 to vector<24x256xf32>
      %24 = arith.maximumf %22, %23 : vector<24x256xf32>
      %c0_21 = arith.constant 0 : index
      %c0_22 = arith.constant 0 : index
      %25 = vector.load %arg7[%c0_21, %c0_22] : memref<1x256xf32, #tpu.memory_space<vmem>>, vector<1x256xf32>
      %26 = vector.broadcast %25 : vector<1x256xf32> to vector<24x256xf32>
      %27 = arith.mulf %24, %26 : vector<24x256xf32>
      %cst_23 = arith.constant dense<0.000000e+00> : vector<24xf32>
      %28 = vector.multi_reduction <add>, %27, %cst_23 [1] : vector<24x256xf32> to vector<24xf32>
      %c0_24 = arith.constant 0 : index
      %c0_25 = arith.constant 0 : index
      %29 = memref.load %arg8[%c0_24, %c0_25] : memref<1x1xf32, #tpu.memory_space<smem>>
      %30 = vector.broadcast %29 : f32 to vector<24xf32>
      %31 = arith.addf %28, %30 : vector<24xf32>
      %32 = arith.negf %31 : vector<24xf32>
      %33 = math.exp %32 : vector<24xf32>
      %cst_26 = arith.constant 1.000000e+00 : f32
      %34 = vector.broadcast %cst_26 : f32 to vector<24xf32>
      %35 = arith.addf %34, %33 : vector<24xf32>
      %36 = arith.divf %34, %35 : vector<24xf32>
      %37 = vector.shape_cast %36 : vector<24xf32> to vector<1x1x24xf32>
      %c0_27 = arith.constant 0 : index
      %c0_28 = arith.constant 0 : index
      %c0_29 = arith.constant 0 : index
      %38 = vector.load %arg9[%c0_27, %c0_28, %c0_29] : memref<1x1x24xf32, #tpu.memory_space<vmem>>, vector<1x1x24xf32>
      tpu.vector_store %arg9[%c0_27, %c0_28, %c0_29], %37 {strides = array<i32>} : memref<1x1x24xf32, #tpu.memory_space<vmem>>, vector<1x1x24xf32>,
    } else {
    }
    return
  }
  func.func @transform_0(%arg0: i32, %arg1: i32) -> (i32, i32) {
    %c0_i32 = arith.constant 0 : i32
    return %arg0, %arg1 : i32, i32
  }
  func.func @transform_1(%arg0: i32, %arg1: i32) -> (i32, i32) {
    %c0_i32 = arith.constant 0 : i32
    %c0_i32_0 = arith.constant 0 : i32
    return %arg1, %c0_i32 : i32, i32
  }
  func.func @transform_2(%arg0: i32, %arg1: i32) -> (i32, i32) {
    %c0_i32 = arith.constant 0 : i32
    %c0_i32_0 = arith.constant 0 : i32
    %c0_i32_1 = arith.constant 0 : i32
    return %c0_i32, %c0_i32_0 : i32, i32
  }
  func.func @transform_3(%arg0: i32, %arg1: i32) -> (i32, i32) {
    %c0_i32 = arith.constant 0 : i32
    %c0_i32_0 = arith.constant 0 : i32
    %c0_i32_1 = arith.constant 0 : i32
    return %c0_i32, %c0_i32_0 : i32, i32
  }
  func.func @transform_4(%arg0: i32, %arg1: i32) -> (i32, i32) {
    %c0_i32 = arith.constant 0 : i32
    %c0_i32_0 = arith.constant 0 : i32
    %c0_i32_1 = arith.constant 0 : i32
    return %c0_i32, %c0_i32_0 : i32, i32
  }
  func.func @transform_5(%arg0: i32, %arg1: i32) -> (i32, i32) {
    %c0_i32 = arith.constant 0 : i32
    %c0_i32_0 = arith.constant 0 : i32
    %c0_i32_1 = arith.constant 0 : i32
    return %c0_i32, %c0_i32_0 : i32, i32
  }
  func.func @transform_6(%arg0: i32, %arg1: i32) -> (i32, i32) {
    %c0_i32 = arith.constant 0 : i32
    %c0_i32_0 = arith.constant 0 : i32
    %c0_i32_1 = arith.constant 0 : i32
    return %c0_i32, %c0_i32_0 : i32, i32
  }
  func.func @transform_7(%arg0: i32, %arg1: i32) -> (i32, i32, i32) {
    %c0_i32 = arith.constant 0 : i32
    %c0_i32_0 = arith.constant 0 : i32
    %c0_i32_1 = arith.constant 0 : i32
    return %arg0, %c0_i32, %c0_i32_0 : i32, i32, i32
  }
}

</mosaic_0001>

<llo_original>
// kernel: tpu_custom_call.1
$region0: #{tpu_custom_call.1}
  #allocation0 [shape = 'u32[]', space=smem, size = 0x4, offset = 0x4, fixed_abs, tag = 'smem constant byte address 0x4 - core index']
  #allocation1 [shape = 'u32[72,128]{1,0:T(1,128)}', space=vmem, size = 0x9000, scoped, tag = 'internal scratch']
  #allocation2 [shape = 'f32[24,512]{1,0:T(8,128)}', space=vmem, size = 0xc000, scoped, tag = 'scratch operand']
  #allocation3 [shape = 'f32[1,1]{1,0:T(1,128)S(6)}', space=smem, size = 0x200, scoped, tag = 'scoped memory for tpu_custom_call.1']
  %s0 = inlined_call_operand.hbm [shape: f32[24,160], index: 0, kind: input, shape index: {}]
  %s1 = inlined_call_operand.hbm [shape: f32[160,512], index: 1, kind: input, shape index: {}]
  %s2 = inlined_call_operand.hbm [shape: f32[1,512], index: 2, kind: input, shape index: {}]
  %s3 = inlined_call_operand.hbm [shape: f32[512,256], index: 3, kind: input, shape index: {}]
  %s4 = inlined_call_operand.vmem [shape: f32[1,256], index: 4, kind: input, shape index: {}]
  %s5 = inlined_call_operand.vmem [shape: f32[1,256], index: 5, kind: input, shape index: {}]
  %s6 = inlined_call_operand.<no memory space> [shape: f32[1,1], index: 6, kind: input, shape index: {}]
  %s7 = inlined_call_operand.hbm [shape: f32[1,1,24], index: 7, kind: output, shape index: {}]
  %s8 = sld [smem:[#allocation0]]
  $region62: #{tpu_custom_call.1} parent=0
    _
  %s10 = ssub.s32 1, %s8
  %s11 = scalar_select 0, %s10, %s8
  %12 = sst [smem:[#allocation3]] %s6
  $region1: #{tpu_custom_call.1} parent=0
    #allocation4 [shape = 'u8[24576]{0}', space=vmem, size = 0x6000, scoped, tag = 'input window, operand 0, single buffered']
    #allocation5 [shape = 's32[1]{0}', space=sflag, size = 0x4, scoped, tag = 'scoped memory for tpu_custom_call.1']
    #allocation6 [shape = 's32[1]{0}', space=sflag, size = 0x4, scoped, tag = 'scoped memory for tpu_custom_call.1']
    #allocation7 [shape = 'u8[327680]{0}', space=vmem, size = 0x50000, scoped, tag = 'input window, operand 1, single buffered']
    #allocation8 [shape = 's32[1]{0}', space=sflag, size = 0x4, scoped, tag = 'scoped memory for tpu_custom_call.1']
    #allocation9 [shape = 'u8[2048]{0}', space=vmem, size = 0x800, scoped, tag = 'input window, operand 2, single buffered']
    #allocation10 [shape = 'u8[524288]{0}', space=vmem, size = 0x80000, scoped, tag = 'input window, operand 3, single buffered']
    #allocation11 [shape = 's32[1]{0}', space=sflag, size = 0x4, scoped, tag = 'scoped memory for tpu_custom_call.1']
    #allocation12 [shape = 'u8[512]{0}', space=vmem, size = 0x400, scoped, tag = 'output window, operand 0, single buffered']
    %13 = vsyncpa [#allocation5], 0
    %14 = vsyncpa [#allocation8], 0
    %15 = vsyncpa [#allocation11], 0
    %16 = vsyncpa [#allocation6], 0
    // Predicated region
    $region2: #{tpu_custom_call.1} parent=1 // pred_check
      _
    $region3: #{tpu_custom_call.1} parent=1 // pred_check_branch
      %18 = sbr.rel (0) target = $region5
    $region4: #{tpu_custom_call.1} parent=1 // pred_region
      %20 = vsyncadd [#allocation5], 0
      %s21 = sshll.u32 %s0, 4
      %s22 = int_to_ptr.hbm [resolvable:$true] %s21
      %s23 = sshll.u32 [#allocation4], 4
      %s24 = int_to_ptr.vmem [resolvable:$true] %s23
      %29 = dma.hbm_to_vmem [thread:$0]  %s22, 768, %s24, [#allocation5], 256, 256, 16
    $region5: #{tpu_custom_call.1} parent=1 // pred_fallthru
      _
    // Predicated region
    $region6: #{tpu_custom_call.1} parent=1 // pred_check
      _
    $region7: #{tpu_custom_call.1} parent=1 // pred_check_branch
      %31 = sbr.rel (0) target = $region9
    $region8: #{tpu_custom_call.1} parent=1 // pred_region
      %33 = vsyncadd [#allocation8], 0
      %s34 = sshll.u32 %s1, 4
      %s35 = int_to_ptr.hbm [resolvable:$true] %s34
      %s36 = sshll.u32 [#allocation7], 4
      %s37 = int_to_ptr.vmem [resolvable:$true] %s36
      %42 = dma.hbm_to_vmem [thread:$0]  %s35, 10240, %s37, [#allocation8], 512, 512, 32
    $region9: #{tpu_custom_call.1} parent=1 // pred_fallthru
      _
    // Predicated region
    $region10: #{tpu_custom_call.1} parent=1 // pred_check
      _
    $region11: #{tpu_custom_call.1} parent=1 // pred_check_branch
      %44 = sbr.rel (0) target = $region13
    $region12: #{tpu_custom_call.1} parent=1 // pred_region
      %46 = vsyncadd [#allocation8], 0
      %s48 = sshll.u32 %s2, 4
      %s49 = int_to_ptr.hbm [resolvable:$true] %s48
      %s50 = sshll.u32 [#allocation9], 4
      %s51 = int_to_ptr.vmem [resolvable:$true] %s50
      %53 = dma.hbm_to_vmem [thread:$0]  %s49, 64, %s51, [#allocation8]
    $region13: #{tpu_custom_call.1} parent=1 // pred_fallthru
      _
    // Predicated region
    $region14: #{tpu_custom_call.1} parent=1 // pred_check
      _
    $region15: #{tpu_custom_call.1} parent=1 // pred_check_branch
      %55 = sbr.rel (0) target = $region17
    $region16: #{tpu_custom_call.1} parent=1 // pred_region
      %57 = vsyncadd [#allocation11], 0
      %s58 = sshll.u32 %s3, 4
      %s59 = int_to_ptr.hbm [resolvable:$true] %s58
      %s60 = sshll.u32 [#allocation10], 4
      %s61 = int_to_ptr.vmem [resolvable:$true] %s60
      %66 = dma.hbm_to_vmem [thread:$0]  %s59, 16384, %s61, [#allocation11], 256, 256, 16
    $region17: #{tpu_custom_call.1} parent=1 // pred_fallthru
      _
    // Predicated region
    $region18: #{tpu_custom_call.1} parent=1 // pred_check
      _
    $region19: #{tpu_custom_call.1} parent=1 // pred_check_branch
      %68 = sbr.rel (0) target = $region21
    $region20: #{tpu_custom_call.1} parent=1 // pred_region
      _
    $region21: #{tpu_custom_call.1} parent=1 // pred_fallthru
      _
    // Predicated region
    $region22: #{tpu_custom_call.1} parent=1 // pred_check
      _
    $region23: #{tpu_custom_call.1} parent=1 // pred_check_branch
      %70 = sbr.rel (0) target = $region25
    $region24: #{tpu_custom_call.1} parent=1 // pred_region
      _
    $region25: #{tpu_custom_call.1} parent=1 // pred_fallthru
      _
    // Predicated region
    $region26: #{tpu_custom_call.1} parent=1 // pred_check
      _
    $region27: #{tpu_custom_call.1} parent=1 // pred_check_branch
      %72 = sbr.rel (0) target = $region29
    $region28: #{tpu_custom_call.1} parent=1 // pred_region
      _
    $region29: #{tpu_custom_call.1} parent=1 // pred_fallthru
      _
    // Predicated region
    $region30: #{tpu_custom_call.1} parent=1 // pred_check
      _
    $region31: #{tpu_custom_call.1} parent=1 // pred_check_branch
      %74 = sbr.rel (0) target = $region33
    $region32: #{tpu_custom_call.1} parent=1 // pred_region
      %76 = dma.done [#allocation5], 768
    $region33: #{tpu_custom_call.1} parent=1 // pred_fallthru
      _
    // Predicated region
    $region34: #{tpu_custom_call.1} parent=1 // pred_check
      _
    $region35: #{tpu_custom_call.1} parent=1 // pred_check_branch
      %78 = sbr.rel (0) target = $region37
    $region36: #{tpu_custom_call.1} parent=1 // pred_region
      %80 = dma.done [#allocation8], 10240
    $region37: #{tpu_custom_call.1} parent=1 // pred_fallthru
      _
    // Predicated region
    $region38: #{tpu_custom_call.1} parent=1 // pred_check
      _
    $region39: #{tpu_custom_call.1} parent=1 // pred_check_branch
      %82 = sbr.rel (0) target = $region41
    $region40: #{tpu_custom_call.1} parent=1 // pred_region
      %84 = dma.done [#allocation8], 64
    $region41: #{tpu_custom_call.1} parent=1 // pred_fallthru
      _
    // Predicated region
    $region42: #{tpu_custom_call.1} parent=1 // pred_check
      _
    $region43: #{tpu_custom_call.1} parent=1 // pred_check_branch
      %86 = sbr.rel (0) target = $region45
    $region44: #{tpu_custom_call.1} parent=1 // pred_region
      %88 = dma.done [#allocation11], 16384
    $region45: #{tpu_custom_call.1} parent=1 // pred_fallthru
      _
    %p89 = scmp.eq.s32.totalorder 0, 0
    // Predicated region
    $region46: #{tpu_custom_call.1} parent=1 // pred_check
      %p90 = pneg %p89
    $region47: #{tpu_custom_call.1} parent=1 // pred_check_branch
      %92 = sbr.rel (%p90) target = $region49
    $region48: #{tpu_custom_call.1} parent=1 // pred_region
      %93 = vst [vmem:[#allocation2] sm:$0xff] 0.0
      %94 = vst [vmem:[#allocation2 + $0x8] sm:$0xff] 0.0
      %95 = vst [vmem:[#allocation2 + $0x10] sm:$0xff] 0.0
      %96 = vst [vmem:[#allocation2 + $0x18] sm:$0xff] 0.0
      %97 = vst [vmem:[#allocation2 + $0x20] sm:$0xff] 0.0
      %98 = vst [vmem:[#allocation2 + $0x28] sm:$0xff] 0.0
      %99 = vst [vmem:[#allocation2 + $0x30] sm:$0xff] 0.0
      %100 = vst [vmem:[#allocation2 + $0x38] sm:$0xff] 0.0
      %101 = vst [vmem:[#allocation2 + $0x40] sm:$0xff] 0.0
      %102 = vst [vmem:[#allocation2 + $0x48] sm:$0xff] 0.0
      %103 = vst [vmem:[#allocation2 + $0x50] sm:$0xff] 0.0
      %104 = vst [vmem:[#allocation2 + $0x58] sm:$0xff] 0.0
    $region49: #{tpu_custom_call.1} parent=1 // pred_fallthru
      _
    %v105 = vld [vmem:[#allocation2] sm:$0xff]
    %v106 = vld [vmem:[#allocation2 + $0x8] sm:$0xff]
    %v107 = vld [vmem:[#allocation2 + $0x10] sm:$0xff]
    %v108 = vld [vmem:[#allocation2 + $0x18] sm:$0xff]
    %v109 = vld [vmem:[#allocation2 + $0x20] sm:$0xff]
    %v110 = vld [vmem:[#allocation2 + $0x28] sm:$0xff]
    %v111 = vld [vmem:[#allocation2 + $0x30] sm:$0xff]
    %v112 = vld [vmem:[#allocation2 + $0x38] sm:$0xff]
    %v113 = vld [vmem:[#allocation2 + $0x40] sm:$0xff]
    %v114 = vld [vmem:[#allocation2 + $0x48] sm:$0xff]
    %v115 = vld [vmem:[#allocation2 + $0x50] sm:$0xff]
    %v116 = vld [vmem:[#allocation2 + $0x58] sm:$0xff]
    %v117 = vld [vmem:[#allocation4] sm:$0xff]
    %v118 = vld [vmem:[#allocation4 + $0x8] sm:$0xff]
    %v119 = vld [vmem:[#allocation4 + $0x10] sm:$0xff]
    %v120 = vld [vmem:[#allocation4 + $0x18] sm:$0xff]
    %v121 = vld [vmem:[#allocation4 + $0x20] sm:$0xff]
    %v122 = vld [vmem:[#allocation4 + $0x28] sm:$0xff]
    %v123 = vld [vmem:[#allocation7] sm:$0xff]
    %v124 = vld [vmem:[#allocation7 + $0x8] sm:$0xff]
    %v125 = vld [vmem:[#allocation7 + $0x10] sm:$0xff]
    %v126 = vld [vmem:[#allocation7 + $0x18] sm:$0xff]
    %v127 = vld [vmem:[#allocation7 + $0x20] sm:$0xff]
    %v128 = vld [vmem:[#allocation7 + $0x28] sm:$0xff]
    %v129 = vld [vmem:[#allocation7 + $0x30] sm:$0xff]
    %v130 = vld [vmem:[#allocation7 + $0x38] sm:$0xff]
    %v131 = vld [vmem:[#allocation7 + $0x40] sm:$0xff]
    %v132 = vld [vmem:[#allocation7 + $0x48] sm:$0xff]
    %v133 = vld [vmem:[#allocation7 + $0x50] sm:$0xff]
    %v134 = vld [vmem:[#allocation7 + $0x58] sm:$0xff]
    %v135 = vld [vmem:[#allocation7 + $0x60] sm:$0xff]
    %v136 = vld [vmem:[#allocation7 + $0x68] sm:$0xff]
    %v137 = vld [vmem:[#allocation7 + $0x70] sm:$0xff]
    %v138 = vld [vmem:[#allocation7 + $0x78] sm:$0xff]
    %v139 = vld [vmem:[#allocation7 + $0x80] sm:$0xff]
    %v140 = vld [vmem:[#allocation7 + $0x88] sm:$0xff]
    %v141 = vld [vmem:[#allocation7 + $0x90] sm:$0xff]
    %v142 = vld [vmem:[#allocation7 + $0x98] sm:$0xff]
    %v143 = vld [vmem:[#allocation7 + $0xa0] sm:$0xff]
    %v144 = vld [vmem:[#allocation7 + $0xa8] sm:$0xff]
    %v145 = vld [vmem:[#allocation7 + $0xb0] sm:$0xff]
    %v146 = vld [vmem:[#allocation7 + $0xb8] sm:$0xff]
    %v147 = vld [vmem:[#allocation7 + $0xc0] sm:$0xff]
    %v148 = vld [vmem:[#allocation7 + $0xc8] sm:$0xff]
    %v149 = vld [vmem:[#allocation7 + $0xd0] sm:$0xff]
    %v150 = vld [vmem:[#allocation7 + $0xd8] sm:$0xff]
    %v151 = vld [vmem:[#allocation7 + $0xe0] sm:$0xff]
    %v152 = vld [vmem:[#allocation7 + $0xe8] sm:$0xff]
    %v153 = vld [vmem:[#allocation7 + $0xf0] sm:$0xff]
    %v154 = vld [vmem:[#allocation7 + $0xf8] sm:$0xff]
    %v155 = vld [vmem:[#allocation7 + $0x100] sm:$0xff]
    %v156 = vld [vmem:[#allocation7 + $0x108] sm:$0xff]
    %v157 = vld [vmem:[#allocation7 + $0x110] sm:$0xff]
    %v158 = vld [vmem:[#allocation7 + $0x118] sm:$0xff]
    %v159 = vld [vmem:[#allocation7 + $0x120] sm:$0xff]
    %v160 = vld [vmem:[#allocation7 + $0x128] sm:$0xff]
    %v161 = vld [vmem:[#allocation7 + $0x130] sm:$0xff]
    %v162 = vld [vmem:[#allocation7 + $0x138] sm:$0xff]
    %v163 = vld [vmem:[#allocation7 + $0x140] sm:$0xff]
    %v164 = vld [vmem:[#allocation7 + $0x148] sm:$0xff]
    %v165 = vld [vmem:[#allocation7 + $0x150] sm:$0xff]
    %v166 = vld [vmem:[#allocation7 + $0x158] sm:$0xff]
    %v167 = vld [vmem:[#allocation7 + $0x160] sm:$0xff]
    %v168 = vld [vmem:[#allocation7 + $0x168] sm:$0xff]
    %v169 = vld [vmem:[#allocation7 + $0x170] sm:$0xff]
    %v170 = vld [vmem:[#allocation7 + $0x178] sm:$0xff]
    %v171 = vld [vmem:[#allocation7 + $0x180] sm:$0xff]
    %v172 = vld [vmem:[#allocation7 + $0x188] sm:$0xff]
    %v173 = vld [vmem:[#allocation7 + $0x190] sm:$0xff]
    %v174 = vld [vmem:[#allocation7 + $0x198] sm:$0xff]
    %v175 = vld [vmem:[#allocation7 + $0x1a0] sm:$0xff]
    %v176 = vld [vmem:[#allocation7 + $0x1a8] sm:$0xff]
    %v177 = vld [vmem:[#allocation7 + $0x1b0] sm:$0xff]
    %v178 = vld [vmem:[#allocation7 + $0x1b8] sm:$0xff]
    %v179 = vld [vmem:[#allocation7 + $0x1c0] sm:$0xff]
    %v180 = vld [vmem:[#allocation7 + $0x1c8] sm:$0xff]
    %v181 = vld [vmem:[#allocation7 + $0x1d0] sm:$0xff]
    %v182 = vld [vmem:[#allocation7 + $0x1d8] sm:$0xff]
    %v183 = vld [vmem:[#allocation7 + $0x1e0] sm:$0xff]
    %v184 = vld [vmem:[#allocation7 + $0x1e8] sm:$0xff]
    %v185 = vld [vmem:[#allocation7 + $0x1f0] sm:$0xff]
    %v186 = vld [vmem:[#allocation7 + $0x1f8] sm:$0xff]
    %v187 = vld [vmem:[#allocation7 + $0x200] sm:$0xff]
    %v188 = vld [vmem:[#allocation7 + $0x208] sm:$0xff]
    %v189 = vld [vmem:[#allocation7 + $0x210] sm:$0xff]
    %v190 = vld [vmem:[#allocation7 + $0x218] sm:$0xff]
    %v191 = vld [vmem:[#allocation7 + $0x220] sm:$0xff]
    %v192 = vld [vmem:[#allocation7 + $0x228] sm:$0xff]
    %v193 = vld [vmem:[#allocation7 + $0x230] sm:$0xff]
    %v194 = vld [vmem:[#allocation7 + $0x238] sm:$0xff]
    %v195 = vld [vmem:[#allocation7 + $0x240] sm:$0xff]
    %v196 = vld [vmem:[#allocation7 + $0x248] sm:$0xff]
    %v197 = vld [vmem:[#allocation7 + $0x250] sm:$0xff]
    %v198 = vld [vmem:[#allocation7 + $0x258] sm:$0xff]
    %v199 = vld [vmem:[#allocation7 + $0x260] sm:$0xff]
    %v200 = vld [vmem:[#allocation7 + $0x268] sm:$0xff]
    %v201 = vld [vmem:[#allocation7 + $0x270] sm:$0xff]
    %v202 = vld [vmem:[#allocation7 + $0x278] sm:$0xff]
    %vm203 = vcmask 261120
    %v205 = vsel %vm203, %v118, 0
    %v208 = vsel %vm203, %v120, 0
    %v211 = vsel %vm203, %v122, 0
    %213 = vmatpush.msra.mxu0 %v183
    %214 = vmatpush.msra.mxu0 %v179
    %215 = vmatpush.msra.mxu0 %v175
    %216 = vmatpush.msra.mxu0 %v171
    %217 = vmatpush.msra.mxu0 %v167
    %218 = vmatpush.msra.mxu0 %v163
    %219 = vmatpush.msra.mxu0 %v159
    %220 = vmatpush.msra.mxu0 %v155
    %221 = vmatpush.msra.mxu0 %v151
    %222 = vmatpush.msra.mxu0 %v147
    %223 = vmatpush.msra.mxu0 %v143
    %224 = vmatpush.msra.mxu0 %v139
    %225 = vmatpush.msra.mxu0 %v135
    %226 = vmatpush.msra.mxu0 %v131
    %227 = vmatpush.msra.mxu0 %v127
    %228 = vmatpush.msra.mxu0 %v123
    %229 = vmatmul.f32.gmra.mxu0 %v117
    %v230 = vpop.f32.mrf.mxu0
    %v231 = vadd.f32 0.0, %v230
    %232 = vmatmul.f32.gmra.mxu0 %v119
    %v233 = vpop.f32.mrf.mxu0
    %v234 = vadd.f32 0.0, %v233
    %235 = vmatmul.f32.gmra.mxu0 %v121
    %v236 = vpop.f32.mrf.mxu0
    %v237 = vadd.f32 0.0, %v236
    %238 = vdwg.mxu0
    %239 = vmatpush.msra.mxu0 0.0
    %240 = vmatpush.msra.mxu0 0.0
    %241 = vmatpush.msra.mxu0 0.0
    %242 = vmatpush.msra.mxu0 0.0
    %243 = vmatpush.msra.mxu0 0.0
    %244 = vmatpush.msra.mxu0 0.0
    %245 = vmatpush.msra.mxu0 0.0
    %246 = vmatpush.msra.mxu0 0.0
    %247 = vmatpush.msra.mxu0 0.0
    %248 = vmatpush.msra.mxu0 0.0
    %249 = vmatpush.msra.mxu0 0.0
    %250 = vmatpush.msra.mxu0 0.0
    %251 = vmatpush.msra.mxu0 %v199
    %252 = vmatpush.msra.mxu0 %v195
    %253 = vmatpush.msra.mxu0 %v191
    %254 = vmatpush.msra.mxu0 %v187
    %255 = vmatmul.f32.gmra.mxu0 %v205
    %v256 = vpop.f32.mrf.mxu0
    %v257 = vadd.f32 %v231, %v256
    %258 = vmatmul.f32.gmra.mxu0 %v208
    %v259 = vpop.f32.mrf.mxu0
    %v260 = vadd.f32 %v234, %v259
    %261 = vmatmul.f32.gmra.mxu0 %v211
    %v262 = vpop.f32.mrf.mxu0
    %v263 = vadd.f32 %v237, %v262
    %264 = vdwg.mxu0
    %265 = vmatpush.msra.mxu0 %v184
    %266 = vmatpush.msra.mxu0 %v180
    %267 = vmatpush.msra.mxu0 %v176
    %268 = vmatpush.msra.mxu0 %v172
    %269 = vmatpush.msra.mxu0 %v168
    %270 = vmatpush.msra.mxu0 %v164
    %271 = vmatpush.msra.mxu0 %v160
    %272 = vmatpush.msra.mxu0 %v156
    %273 = vmatpush.msra.mxu0 %v152
    %274 = vmatpush.msra.mxu0 %v148
    %275 = vmatpush.msra.mxu0 %v144
    %276 = vmatpush.msra.mxu0 %v140
    %277 = vmatpush.msra.mxu0 %v136
    %278 = vmatpush.msra.mxu0 %v132
    %279 = vmatpush.msra.mxu0 %v128
    %280 = vmatpush.msra.mxu0 %v124
    %281 = vmatmul.f32.gmra.mxu0 %v117
    %v282 = vpop.f32.mrf.mxu0
    %v283 = vadd.f32 0.0, %v282
    %284 = vmatmul.f32.gmra.mxu0 %v119
    %v285 = vpop.f32.mrf.mxu0
    %v286 = vadd.f32 0.0, %v285
    %287 = vmatmul.f32.gmra.mxu0 %v121
    %v288 = vpop.f32.mrf.mxu0
    %v289 = vadd.f32 0.0, %v288
    %290 = vdwg.mxu0
    %291 = vmatpush.msra.mxu0 0.0
    %292 = vmatpush.msra.mxu0 0.0
    %293 = vmatpush.msra.mxu0 0.0
    %294 = vmatpush.msra.mxu0 0.0
    %295 = vmatpush.msra.mxu0 0.0
    %296 = vmatpush.msra.mxu0 0.0
    %297 = vmatpush.msra.mxu0 0.0
    %298 = vmatpush.msra.mxu0 0.0
    %299 = vmatpush.msra.mxu0 0.0
    %300 = vmatpush.msra.mxu0 0.0
    %301 = vmatpush.msra.mxu0 0.0
    %302 = vmatpush.msra.mxu0 0.0
    %303 = vmatpush.msra.mxu0 %v200
    %304 = vmatpush.msra.mxu0 %v196
    %305 = vmatpush.msra.mxu0 %v192
    %306 = vmatpush.msra.mxu0 %v188
    %307 = vmatmul.f32.gmra.mxu0 %v205
    %v308 = vpop.f32.mrf.mxu0
    %v309 = vadd.f32 %v283, %v308
    %310 = vmatmul.f32.gmra.mxu0 %v208
    %v311 = vpop.f32.mrf.mxu0
    %v312 = vadd.f32 %v286, %v311
    %313 = vmatmul.f32.gmra.mxu0 %v211
    %v314 = vpop.f32.mrf.mxu0
    %v315 = vadd.f32 %v289, %v314
    %316 = vdwg.mxu0
    %317 = vmatpush.msra.mxu0 %v185
    %318 = vmatpush.msra.mxu0 %v181
    %319 = vmatpush.msra.mxu0 %v177
    %320 = vmatpush.msra.mxu0 %v173
    %321 = vmatpush.msra.mxu0 %v169
    %322 = vmatpush.msra.mxu0 %v165
    %323 = vmatpush.msra.mxu0 %v161
    %324 = vmatpush.msra.mxu0 %v157
    %325 = vmatpush.msra.mxu0 %v153
    %326 = vmatpush.msra.mxu0 %v149
    %327 = vmatpush.msra.mxu0 %v145
    %328 = vmatpush.msra.mxu0 %v141
    %329 = vmatpush.msra.mxu0 %v137
    %330 = vmatpush.msra.mxu0 %v133
    %331 = vmatpush.msra.mxu0 %v129
    %332 = vmatpush.msra.mxu0 %v125
    %333 = vmatmul.f32.gmra.mxu0 %v117
    %v334 = vpop.f32.mrf.mxu0
    %v335 = vadd.f32 0.0, %v334
    %336 = vmatmul.f32.gmra.mxu0 %v119
    %v337 = vpop.f32.mrf.mxu0
    %v338 = vadd.f32 0.0, %v337
    %339 = vmatmul.f32.gmra.mxu0 %v121
    %v340 = vpop.f32.mrf.mxu0
    %v341 = vadd.f32 0.0, %v340
    %342 = vdwg.mxu0
    %343 = vmatpush.msra.mxu0 0.0
    %344 = vmatpush.msra.mxu0 0.0
    %345 = vmatpush.msra.mxu0 0.0
    %346 = vmatpush.msra.mxu0 0.0
    %347 = vmatpush.msra.mxu0 0.0
    %348 = vmatpush.msra.mxu0 0.0
    %349 = vmatpush.msra.mxu0 0.0
    %350 = vmatpush.msra.mxu0 0.0
    %351 = vmatpush.msra.mxu0 0.0
    %352 = vmatpush.msra.mxu0 0.0
    %353 = vmatpush.msra.mxu0 0.0
    %354 = vmatpush.msra.mxu0 0.0
    %355 = vmatpush.msra.mxu0 %v201
    %356 = vmatpush.msra.mxu0 %v197
    %357 = vmatpush.msra.mxu0 %v193
    %358 = vmatpush.msra.mxu0 %v189
    %359 = vmatmul.f32.gmra.mxu0 %v205
    %v360 = vpop.f32.mrf.mxu0
    %v361 = vadd.f32 %v335, %v360
    %362 = vmatmul.f32.gmra.mxu0 %v208
    %v363 = vpop.f32.mrf.mxu0
    %v364 = vadd.f32 %v338, %v363
    %365 = vmatmul.f32.gmra.mxu0 %v211
    %v366 = vpop.f32.mrf.mxu0
    %v367 = vadd.f32 %v341, %v366
    %368 = vdwg.mxu0
    %369 = vmatpush.msra.mxu0 %v186
    %370 = vmatpush.msra.mxu0 %v182
    %371 = vmatpush.msra.mxu0 %v178
    %372 = vmatpush.msra.mxu0 %v174
    %373 = vmatpush.msra.mxu0 %v170
    %374 = vmatpush.msra.mxu0 %v166
    %375 = vmatpush.msra.mxu0 %v162
    %376 = vmatpush.msra.mxu0 %v158
    %377 = vmatpush.msra.mxu0 %v154
    %378 = vmatpush.msra.mxu0 %v150
    %379 = vmatpush.msra.mxu0 %v146
    %380 = vmatpush.msra.mxu0 %v142
    %381 = vmatpush.msra.mxu0 %v138
    %382 = vmatpush.msra.mxu0 %v134
    %383 = vmatpush.msra.mxu0 %v130
    %384 = vmatpush.msra.mxu0 %v126
    %385 = vmatmul.f32.gmra.mxu0 %v117
    %v386 = vpop.f32.mrf.mxu0
    %v387 = vadd.f32 0.0, %v386
    %388 = vmatmul.f32.gmra.mxu0 %v119
    %v389 = vpop.f32.mrf.mxu0
    %v390 = vadd.f32 0.0, %v389
    %391 = vmatmul.f32.gmra.mxu0 %v121
    %v392 = vpop.f32.mrf.mxu0
    %v393 = vadd.f32 0.0, %v392
    %394 = vdwg.mxu0
    %395 = vmatpush.msra.mxu0 0.0
    %396 = vmatpush.msra.mxu0 0.0
    %397 = vmatpush.msra.mxu0 0.0
    %398 = vmatpush.msra.mxu0 0.0
    %399 = vmatpush.msra.mxu0 0.0
    %400 = vmatpush.msra.mxu0 0.0
    %401 = vmatpush.msra.mxu0 0.0
    %402 = vmatpush.msra.mxu0 0.0
    %403 = vmatpush.msra.mxu0 0.0
    %404 = vmatpush.msra.mxu0 0.0
    %405 = vmatpush.msra.mxu0 0.0
    %406 = vmatpush.msra.mxu0 0.0
    %407 = vmatpush.msra.mxu0 %v202
    %408 = vmatpush.msra.mxu0 %v198
    %409 = vmatpush.msra.mxu0 %v194
    %410 = vmatpush.msra.mxu0 %v190
    %411 = vmatmul.f32.gmra.mxu0 %v205
    %v412 = vpop.f32.mrf.mxu0
    %v413 = vadd.f32 %v387, %v412
    %414 = vmatmul.f32.gmra.mxu0 %v208
    %v415 = vpop.f32.mrf.mxu0
    %v416 = vadd.f32 %v390, %v415
    %417 = vmatmul.f32.gmra.mxu0 %v211
    %v418 = vpop.f32.mrf.mxu0
    %v419 = vadd.f32 %v393, %v418
    %420 = vdwg.mxu0
    %v421 = vadd.f32 %v105, %v257
    %v422 = vadd.f32 %v106, %v309
    %v423 = vadd.f32 %v107, %v361
    %v424 = vadd.f32 %v108, %v413
    %v425 = vadd.f32 %v109, %v260
    %v426 = vadd.f32 %v110, %v312
    %v427 = vadd.f32 %v111, %v364
    %v428 = vadd.f32 %v112, %v416
    %v429 = vadd.f32 %v113, %v263
    %v430 = vadd.f32 %v114, %v315
    %v431 = vadd.f32 %v115, %v367
    %v432 = vadd.f32 %v116, %v419
    %433 = vst [vmem:[#allocation2] sm:$0xff] %v421
    %434 = vst [vmem:[#allocation2 + $0x8] sm:$0xff] %v422
    %435 = vst [vmem:[#allocation2 + $0x10] sm:$0xff] %v423
    %436 = vst [vmem:[#allocation2 + $0x18] sm:$0xff] %v424
    %437 = vst [vmem:[#allocation2 + $0x20] sm:$0xff] %v425
    %438 = vst [vmem:[#allocation2 + $0x28] sm:$0xff] %v426
    %439 = vst [vmem:[#allocation2 + $0x30] sm:$0xff] %v427
    %440 = vst [vmem:[#allocation2 + $0x38] sm:$0xff] %v428
    %441 = vst [vmem:[#allocation2 + $0x40] sm:$0xff] %v429
    %442 = vst [vmem:[#allocation2 + $0x48] sm:$0xff] %v430
    %443 = vst [vmem:[#allocation2 + $0x50] sm:$0xff] %v431
    %444 = vst [vmem:[#allocation2 + $0x58] sm:$0xff] %v432
    // Predicated region
    $region50: #{tpu_custom_call.1} parent=1 // pred_check
      %p445 = pneg %p89
    $region51: #{tpu_custom_call.1} parent=1 // pred_check_branch
      %447 = sbr.rel (%p445) target = $region53
    $region52: #{tpu_custom_call.1} parent=1 // pred_region
      %v448 = vld [vmem:[#allocation2] sm:$0xff]
      %v449 = vld [vmem:[#allocation2 + $0x8] sm:$0xff]
      %v450 = vld [vmem:[#allocation2 + $0x10] sm:$0xff]
      %v451 = vld [vmem:[#allocation2 + $0x18] sm:$0xff]
      %v452 = vld [vmem:[#allocation2 + $0x20] sm:$0xff]
      %v453 = vld [vmem:[#allocation2 + $0x28] sm:$0xff]
      %v454 = vld [vmem:[#allocation2 + $0x30] sm:$0xff]
      %v455 = vld [vmem:[#allocation2 + $0x38] sm:$0xff]
      %v456 = vld [vmem:[#allocation2 + $0x40] sm:$0xff]
      %v457 = vld [vmem:[#allocation2 + $0x48] sm:$0xff]
      %v458 = vld [vmem:[#allocation2 + $0x50] sm:$0xff]
      %v459 = vld [vmem:[#allocation2 + $0x58] sm:$0xff]
      %v460 = vld [vmem:[#allocation9] sm:$0xf]
      %v462 = vperm.slane %v460, 0
      %v463 = vperm.slane %v460, 1
      %v464 = vperm.slane %v460, 2
      %v465 = vperm.slane %v460, 3
      %v470 = vadd.f32 %v448, %v462
      %v471 = vadd.f32 %v449, %v463
      %v472 = vadd.f32 %v450, %v464
      %v473 = vadd.f32 %v451, %v465
      %v474 = vadd.f32 %v452, %v462
      %v475 = vadd.f32 %v453, %v463
      %v476 = vadd.f32 %v454, %v464
      %v477 = vadd.f32 %v455, %v465
      %v478 = vadd.f32 %v456, %v462
      %v479 = vadd.f32 %v457, %v463
      %v480 = vadd.f32 %v458, %v464
      %v481 = vadd.f32 %v459, %v465
      %v482 = vmax.f32 %v470, 0.0
      %v483 = vmax.f32 %v471, 0.0
      %v484 = vmax.f32 %v472, 0.0
      %v485 = vmax.f32 %v473, 0.0
      %v486 = vmax.f32 %v474, 0.0
      %v487 = vmax.f32 %v475, 0.0
      %v488 = vmax.f32 %v476, 0.0
      %v489 = vmax.f32 %v477, 0.0
      %v490 = vmax.f32 %v478, 0.0
      %v491 = vmax.f32 %v479, 0.0
      %v492 = vmax.f32 %v480, 0.0
      %v493 = vmax.f32 %v481, 0.0
      %v494 = vld [vmem:[#allocation10] sm:$0xff]
      %v495 = vld [vmem:[#allocation10 + $0x8] sm:$0xff]
      %v496 = vld [vmem:[#allocation10 + $0x10] sm:$0xff]
      %v497 = vld [vmem:[#allocation10 + $0x18] sm:$0xff]
      %v498 = vld [vmem:[#allocation10 + $0x20] sm:$0xff]
      %v499 = vld [vmem:[#allocation10 + $0x28] sm:$0xff]
      %v500 = vld [vmem:[#allocation10 + $0x30] sm:$0xff]
      %v501 = vld [vmem:[#allocation10 + $0x38] sm:$0xff]
      %v502 = vld [vmem:[#allocation10 + $0x40] sm:$0xff]
      %v503 = vld [vmem:[#allocation10 + $0x48] sm:$0xff]
      %v504 = vld [vmem:[#allocation10 + $0x50] sm:$0xff]
      %v505 = vld [vmem:[#allocation10 + $0x58] sm:$0xff]
      %v506 = vld [vmem:[#allocation10 + $0x60] sm:$0xff]
      %v507 = vld [vmem:[#allocation10 + $0x68] sm:$0xff]
      %v508 = vld [vmem:[#allocation10 + $0x70] sm:$0xff]
      %v509 = vld [vmem:[#allocation10 + $0x78] sm:$0xff]
      %v510 = vld [vmem:[#allocation10 + $0x80] sm:$0xff]
      %v511 = vld [vmem:[#allocation10 + $0x88] sm:$0xff]
      %v512 = vld [vmem:[#allocation10 + $0x90] sm:$0xff]
      %v513 = vld [vmem:[#allocation10 + $0x98] sm:$0xff]
      %v514 = vld [vmem:[#allocation10 + $0xa0] sm:$0xff]
      %v515 = vld [vmem:[#allocation10 + $0xa8] sm:$0xff]
      %v516 = vld [vmem:[#allocation10 + $0xb0] sm:$0xff]
      %v517 = vld [vmem:[#allocation10 + $0xb8] sm:$0xff]
      %v518 = vld [vmem:[#allocation10 + $0xc0] sm:$0xff]
      %v519 = vld [vmem:[#allocation10 + $0xc8] sm:$0xff]
      %v520 = vld [vmem:[#allocation10 + $0xd0] sm:$0xff]
      %v521 = vld [vmem:[#allocation10 + $0xd8] sm:$0xff]
      %v522 = vld [vmem:[#allocation10 + $0xe0] sm:$0xff]
      %v523 = vld [vmem:[#allocation10 + $0xe8] sm:$0xff]
      %v524 = vld [vmem:[#allocation10 + $0xf0] sm:$0xff]
      %v525 = vld [vmem:[#allocation10 + $0xf8] sm:$0xff]
      %v526 = vld [vmem:[#allocation10 + $0x100] sm:$0xff]
      %v527 = vld [vmem:[#allocation10 + $0x108] sm:$0xff]
      %v528 = vld [vmem:[#allocation10 + $0x110] sm:$0xff]
      %v529 = vld [vmem:[#allocation10 + $0x118] sm:$0xff]
      %v530 = vld [vmem:[#allocation10 + $0x120] sm:$0xff]
      %v531 = vld [vmem:[#allocation10 + $0x128] sm:$0xff]
      %v532 = vld [vmem:[#allocation10 + $0x130] sm:$0xff]
      %v533 = vld [vmem:[#allocation10 + $0x138] sm:$0xff]
      %v534 = vld [vmem:[#allocation10 + $0x140] sm:$0xff]
      %v535 = vld [vmem:[#allocation10 + $0x148] sm:$0xff]
      %v536 = vld [vmem:[#allocation10 + $0x150] sm:$0xff]
      %v537 = vld [vmem:[#allocation10 + $0x158] sm:$0xff]
      %v538 = vld [vmem:[#allocation10 + $0x160] sm:$0xff]
      %v539 = vld [vmem:[#allocation10 + $0x168] sm:$0xff]
      %v540 = vld [vmem:[#allocation10 + $0x170] sm:$0xff]
      %v541 = vld [vmem:[#allocation10 + $0x178] sm:$0xff]
      %v542 = vld [vmem:[#allocation10 + $0x180] sm:$0xff]
      %v543 = vld [vmem:[#allocation10 + $0x188] sm:$0xff]
      %v544 = vld [vmem:[#allocation10 + $0x190] sm:$0xff]
      %v545 = vld [vmem:[#allocation10 + $0x198] sm:$0xff]
      %v546 = vld [vmem:[#allocation10 + $0x1a0] sm:$0xff]
      %v547 = vld [vmem:[#allocation10 + $0x1a8] sm:$0xff]
      %v548 = vld [vmem:[#allocation10 + $0x1b0] sm:$0xff]
      %v549 = vld [vmem:[#allocation10 + $0x1b8] sm:$0xff]
      %v550 = vld [vmem:[#allocation10 + $0x1c0] sm:$0xff]
      %v551 = vld [vmem:[#allocation10 + $0x1c8] sm:$0xff]
      %v552 = vld [vmem:[#allocation10 + $0x1d0] sm:$0xff]
      %v553 = vld [vmem:[#allocation10 + $0x1d8] sm:$0xff]
      %v554 = vld [vmem:[#allocation10 + $0x1e0] sm:$0xff]
      %v555 = vld [vmem:[#allocation10 + $0x1e8] sm:$0xff]
      %v556 = vld [vmem:[#allocation10 + $0x1f0] sm:$0xff]
      %v557 = vld [vmem:[#allocation10 + $0x1f8] sm:$0xff]
      %v558 = vld [vmem:[#allocation10 + $0x200] sm:$0xff]
      %v559 = vld [vmem:[#allocation10 + $0x208] sm:$0xff]
      %v560 = vld [vmem:[#allocation10 + $0x210] sm:$0xff]
      %v561 = vld [vmem:[#allocation10 + $0x218] sm:$0xff]
      %v562 = vld [vmem:[#allocation10 + $0x220] sm:$0xff]
      %v563 = vld [vmem:[#allocation10 + $0x228] sm:$0xff]
      %v564 = vld [vmem:[#allocation10 + $0x230] sm:$0xff]
      %v565 = vld [vmem:[#allocation10 + $0x238] sm:$0xff]
      %v566 = vld [vmem:[#allocation10 + $0x240] sm:$0xff]
      %v567 = vld [vmem:[#allocation10 + $0x248] sm:$0xff]
      %v568 = vld [vmem:[#allocation10 + $0x250] sm:$0xff]
      %v569 = vld [vmem:[#allocation10 + $0x258] sm:$0xff]
      %v570 = vld [vmem:[#allocation10 + $0x260] sm:$0xff]
      %v571 = vld [vmem:[#allocation10 + $0x268] sm:$0xff]
      %v572 = vld [vmem:[#allocation10 + $0x270] sm:$0xff]
      %v573 = vld [vmem:[#allocation10 + $0x278] sm:$0xff]
      %v574 = vld [vmem:[#allocation10 + $0x280] sm:$0xff]
      %v575 = vld [vmem:[#allocation10 + $0x288] sm:$0xff]
      %v576 = vld [vmem:[#allocation10 + $0x290] sm:$0xff]
      %v577 = vld [vmem:[#allocation10 + $0x298] sm:$0xff]
      %v578 = vld [vmem:[#allocation10 + $0x2a0] sm:$0xff]
      %v579 = vld [vmem:[#allocation10 + $0x2a8] sm:$0xff]
      %v580 = vld [vmem:[#allocation10 + $0x2b0] sm:$0xff]
      %v581 = vld [vmem:[#allocation10 + $0x2b8] sm:$0xff]
      %v582 = vld [vmem:[#allocation10 + $0x2c0] sm:$0xff]
      %v583 = vld [vmem:[#allocation10 + $0x2c8] sm:$0xff]
      %v584 = vld [vmem:[#allocation10 + $0x2d0] sm:$0xff]
      %v585 = vld [vmem:[#allocation10 + $0x2d8] sm:$0xff]
      %v586 = vld [vmem:[#allocation10 + $0x2e0] sm:$0xff]
      %v587 = vld [vmem:[#allocation10 + $0x2e8] sm:$0xff]
      %v588 = vld [vmem:[#allocation10 + $0x2f0] sm:$0xff]
      %v589 = vld [vmem:[#allocation10 + $0x2f8] sm:$0xff]
      %v590 = vld [vmem:[#allocation10 + $0x300] sm:$0xff]
      %v591 = vld [vmem:[#allocation10 + $0x308] sm:$0xff]
      %v592 = vld [vmem:[#allocation10 + $0x310] sm:$0xff]
      %v593 = vld [vmem:[#allocation10 + $0x318] sm:$0xff]
      %v594 = vld [vmem:[#allocation10 + $0x320] sm:$0xff]
      %v595 = vld [vmem:[#allocation10 + $0x328] sm:$0xff]
      %v596 = vld [vmem:[#allocation10 + $0x330] sm:$0xff]
      %v597 = vld [vmem:[#allocation10 + $0x338] sm:$0xff]
      %v598 = vld [vmem:[#allocation10 + $0x340] sm:$0xff]
      %v599 = vld [vmem:[#allocation10 + $0x348] sm:$0xff]
      %v600 = vld [vmem:[#allocation10 + $0x350] sm:$0xff]
      %v601 = vld [vmem:[#allocation10 + $0x358] sm:$0xff]
      %v602 = vld [vmem:[#allocation10 + $0x360] sm:$0xff]
      %v603 = vld [vmem:[#allocation10 + $0x368] sm:$0xff]
      %v604 = vld [vmem:[#allocation10 + $0x370] sm:$0xff]
      %v605 = vld [vmem:[#allocation10 + $0x378] sm:$0xff]
      %v606 = vld [vmem:[#allocation10 + $0x380] sm:$0xff]
      %v607 = vld [vmem:[#allocation10 + $0x388] sm:$0xff]
      %v608 = vld [vmem:[#allocation10 + $0x390] sm:$0xff]
      %v609 = vld [vmem:[#allocation10 + $0x398] sm:$0xff]
      %v610 = vld [vmem:[#allocation10 + $0x3a0] sm:$0xff]
      %v611 = vld [vmem:[#allocation10 + $0x3a8] sm:$0xff]
      %v612 = vld [vmem:[#allocation10 + $0x3b0] sm:$0xff]
      %v613 = vld [vmem:[#allocation10 + $0x3b8] sm:$0xff]
      %v614 = vld [vmem:[#allocation10 + $0x3c0] sm:$0xff]
      %v615 = vld [vmem:[#allocation10 + $0x3c8] sm:$0xff]
      %v616 = vld [vmem:[#allocation10 + $0x3d0] sm:$0xff]
      %v617 = vld [vmem:[#allocation10 + $0x3d8] sm:$0xff]
      %v618 = vld [vmem:[#allocation10 + $0x3e0] sm:$0xff]
      %v619 = vld [vmem:[#allocation10 + $0x3e8] sm:$0xff]
      %v620 = vld [vmem:[#allocation10 + $0x3f0] sm:$0xff]
      %v621 = vld [vmem:[#allocation10 + $0x3f8] sm:$0xff]
      %v622 = vld [vmem:[%s4] sm:$0x3]
      %v624 = vperm.slane %v622, 0
      %v625 = vperm.slane %v622, 1
      %628 = vmatpush.msra.mxu0 %v524
      %629 = vmatpush.msra.mxu0 %v522
      %630 = vmatpush.msra.mxu0 %v520
      %631 = vmatpush.msra.mxu0 %v518
      %632 = vmatpush.msra.mxu0 %v516
      %633 = vmatpush.msra.mxu0 %v514
      %634 = vmatpush.msra.mxu0 %v512
      %635 = vmatpush.msra.mxu0 %v510
      %636 = vmatpush.msra.mxu0 %v508
      %637 = vmatpush.msra.mxu0 %v506
      %638 = vmatpush.msra.mxu0 %v504
      %639 = vmatpush.msra.mxu0 %v502
      %640 = vmatpush.msra.mxu0 %v500
      %641 = vmatpush.msra.mxu0 %v498
      %642 = vmatpush.msra.mxu0 %v496
      %643 = vmatpush.msra.mxu0 %v494
      %644 = vmatmul.f32.gmra.mxu0 %v482
      %v645 = vpop.f32.mrf.mxu0
      %v646 = vadd.f32 %v624, %v645
      %647 = vmatmul.f32.gmra.mxu0 %v486
      %v648 = vpop.f32.mrf.mxu0
      %v649 = vadd.f32 %v624, %v648
      %650 = vmatmul.f32.gmra.mxu0 %v490
      %v651 = vpop.f32.mrf.mxu0
      %v652 = vadd.f32 %v624, %v651
      %653 = vdwg.mxu0
      %654 = vmatpush.msra.mxu0 %v556
      %655 = vmatpush.msra.mxu0 %v554
      %656 = vmatpush.msra.mxu0 %v552
      %657 = vmatpush.msra.mxu0 %v550
      %658 = vmatpush.msra.mxu0 %v548
      %659 = vmatpush.msra.mxu0 %v546
      %660 = vmatpush.msra.mxu0 %v544
      %661 = vmatpush.msra.mxu0 %v542
      %662 = vmatpush.msra.mxu0 %v540
      %663 = vmatpush.msra.mxu0 %v538
      %664 = vmatpush.msra.mxu0 %v536
      %665 = vmatpush.msra.mxu0 %v534
      %666 = vmatpush.msra.mxu0 %v532
      %667 = vmatpush.msra.mxu0 %v530
      %668 = vmatpush.msra.mxu0 %v528
      %669 = vmatpush.msra.mxu0 %v526
      %670 = vmatmul.f32.gmra.mxu0 %v483
      %v671 = vpop.f32.mrf.mxu0
      %v672 = vadd.f32 %v646, %v671
      %673 = vmatmul.f32.gmra.mxu0 %v487
      %v674 = vpop.f32.mrf.mxu0
      %v675 = vadd.f32 %v649, %v674
      %676 = vmatmul.f32.gmra.mxu0 %v491
      %v677 = vpop.f32.mrf.mxu0
      %v678 = vadd.f32 %v652, %v677
      %679 = vdwg.mxu0
      %680 = vmatpush.msra.mxu0 %v588
      %681 = vmatpush.msra.mxu0 %v586
      %682 = vmatpush.msra.mxu0 %v584
      %683 = vmatpush.msra.mxu0 %v582
      %684 = vmatpush.msra.mxu0 %v580
      %685 = vmatpush.msra.mxu0 %v578
      %686 = vmatpush.msra.mxu0 %v576
      %687 = vmatpush.msra.mxu0 %v574
      %688 = vmatpush.msra.mxu0 %v572
      %689 = vmatpush.msra.mxu0 %v570
      %690 = vmatpush.msra.mxu0 %v568
      %691 = vmatpush.msra.mxu0 %v566
      %692 = vmatpush.msra.mxu0 %v564
      %693 = vmatpush.msra.mxu0 %v562
      %694 = vmatpush.msra.mxu0 %v560
      %695 = vmatpush.msra.mxu0 %v558
      %696 = vmatmul.f32.gmra.mxu0 %v484
      %v697 = vpop.f32.mrf.mxu0
      %v698 = vadd.f32 %v672, %v697
      %699 = vmatmul.f32.gmra.mxu0 %v488
      %v700 = vpop.f32.mrf.mxu0
      %v701 = vadd.f32 %v675, %v700
      %702 = vmatmul.f32.gmra.mxu0 %v492
      %v703 = vpop.f32.mrf.mxu0
      %v704 = vadd.f32 %v678, %v703
      %705 = vdwg.mxu0
      %706 = vmatpush.msra.mxu0 %v620
      %707 = vmatpush.msra.mxu0 %v618
      %708 = vmatpush.msra.mxu0 %v616
      %709 = vmatpush.msra.mxu0 %v614
      %710 = vmatpush.msra.mxu0 %v612
      %711 = vmatpush.msra.mxu0 %v610
      %712 = vmatpush.msra.mxu0 %v608
      %713 = vmatpush.msra.mxu0 %v606
      %714 = vmatpush.msra.mxu0 %v604
      %715 = vmatpush.msra.mxu0 %v602
      %716 = vmatpush.msra.mxu0 %v600
      %717 = vmatpush.msra.mxu0 %v598
      %718 = vmatpush.msra.mxu0 %v596
      %719 = vmatpush.msra.mxu0 %v594
      %720 = vmatpush.msra.mxu0 %v592
      %721 = vmatpush.msra.mxu0 %v590
      %722 = vmatmul.f32.gmra.mxu0 %v485
      %v723 = vpop.f32.mrf.mxu0
      %v724 = vadd.f32 %v698, %v723
      %725 = vmatmul.f32.gmra.mxu0 %v489
      %v726 = vpop.f32.mrf.mxu0
      %v727 = vadd.f32 %v701, %v726
      %728 = vmatmul.f32.gmra.mxu0 %v493
      %v729 = vpop.f32.mrf.mxu0
      %v730 = vadd.f32 %v704, %v729
      %731 = vdwg.mxu0
      %732 = vmatpush.msra.mxu0 %v525
      %733 = vmatpush.msra.mxu0 %v523
      %734 = vmatpush.msra.mxu0 %v521
      %735 = vmatpush.msra.mxu0 %v519
      %736 = vmatpush.msra.mxu0 %v517
      %737 = vmatpush.msra.mxu0 %v515
      %738 = vmatpush.msra.mxu0 %v513
      %739 = vmatpush.msra.mxu0 %v511
      %740 = vmatpush.msra.mxu0 %v509
      %741 = vmatpush.msra.mxu0 %v507
      %742 = vmatpush.msra.mxu0 %v505
      %743 = vmatpush.msra.mxu0 %v503
      %744 = vmatpush.msra.mxu0 %v501
      %745 = vmatpush.msra.mxu0 %v499
      %746 = vmatpush.msra.mxu0 %v497
      %747 = vmatpush.msra.mxu0 %v495
      %748 = vmatmul.f32.gmra.mxu0 %v482
      %v749 = vpop.f32.mrf.mxu0
      %v750 = vadd.f32 %v625, %v749
      %751 = vmatmul.f32.gmra.mxu0 %v486
      %v752 = vpop.f32.mrf.mxu0
      %v753 = vadd.f32 %v625, %v752
      %754 = vmatmul.f32.gmra.mxu0 %v490
      %v755 = vpop.f32.mrf.mxu0
      %v756 = vadd.f32 %v625, %v755
      %757 = vdwg.mxu0
      %758 = vmatpush.msra.mxu0 %v557
      %759 = vmatpush.msra.mxu0 %v555
      %760 = vmatpush.msra.mxu0 %v553
      %761 = vmatpush.msra.mxu0 %v551
      %762 = vmatpush.msra.mxu0 %v549
      %763 = vmatpush.msra.mxu0 %v547
      %764 = vmatpush.msra.mxu0 %v545
      %765 = vmatpush.msra.mxu0 %v543
      %766 = vmatpush.msra.mxu0 %v541
      %767 = vmatpush.msra.mxu0 %v539
      %768 = vmatpush.msra.mxu0 %v537
      %769 = vmatpush.msra.mxu0 %v535
      %770 = vmatpush.msra.mxu0 %v533
      %771 = vmatpush.msra.mxu0 %v531
      %772 = vmatpush.msra.mxu0 %v529
      %773 = vmatpush.msra.mxu0 %v527
      %774 = vmatmul.f32.gmra.mxu0 %v483
      %v775 = vpop.f32.mrf.mxu0
      %v776 = vadd.f32 %v750, %v775
      %777 = vmatmul.f32.gmra.mxu0 %v487
      %v778 = vpop.f32.mrf.mxu0
      %v779 = vadd.f32 %v753, %v778
      %780 = vmatmul.f32.gmra.mxu0 %v491
      %v781 = vpop.f32.mrf.mxu0
      %v782 = vadd.f32 %v756, %v781
      %783 = vdwg.mxu0
      %784 = vmatpush.msra.mxu0 %v589
      %785 = vmatpush.msra.mxu0 %v587
      %786 = vmatpush.msra.mxu0 %v585
      %787 = vmatpush.msra.mxu0 %v583
      %788 = vmatpush.msra.mxu0 %v581
      %789 = vmatpush.msra.mxu0 %v579
      %790 = vmatpush.msra.mxu0 %v577
      %791 = vmatpush.msra.mxu0 %v575
      %792 = vmatpush.msra.mxu0 %v573
      %793 = vmatpush.msra.mxu0 %v571
      %794 = vmatpush.msra.mxu0 %v569
      %795 = vmatpush.msra.mxu0 %v567
      %796 = vmatpush.msra.mxu0 %v565
      %797 = vmatpush.msra.mxu0 %v563
      %798 = vmatpush.msra.mxu0 %v561
      %799 = vmatpush.msra.mxu0 %v559
      %800 = vmatmul.f32.gmra.mxu0 %v484
      %v801 = vpop.f32.mrf.mxu0
      %v802 = vadd.f32 %v776, %v801
      %803 = vmatmul.f32.gmra.mxu0 %v488
      %v804 = vpop.f32.mrf.mxu0
      %v805 = vadd.f32 %v779, %v804
      %806 = vmatmul.f32.gmra.mxu0 %v492
      %v807 = vpop.f32.mrf.mxu0
      %v808 = vadd.f32 %v782, %v807
      %809 = vdwg.mxu0
      %810 = vmatpush.msra.mxu0 %v621
      %811 = vmatpush.msra.mxu0 %v619
      %812 = vmatpush.msra.mxu0 %v617
      %813 = vmatpush.msra.mxu0 %v615
      %814 = vmatpush.msra.mxu0 %v613
      %815 = vmatpush.msra.mxu0 %v611
      %816 = vmatpush.msra.mxu0 %v609
      %817 = vmatpush.msra.mxu0 %v607
      %818 = vmatpush.msra.mxu0 %v605
      %819 = vmatpush.msra.mxu0 %v603
      %820 = vmatpush.msra.mxu0 %v601
      %821 = vmatpush.msra.mxu0 %v599
      %822 = vmatpush.msra.mxu0 %v597
      %823 = vmatpush.msra.mxu0 %v595
      %824 = vmatpush.msra.mxu0 %v593
      %825 = vmatpush.msra.mxu0 %v591
      %826 = vmatmul.f32.gmra.mxu0 %v485
      %v827 = vpop.f32.mrf.mxu0
      %v828 = vadd.f32 %v802, %v827
      %829 = vmatmul.f32.gmra.mxu0 %v489
      %v830 = vpop.f32.mrf.mxu0
      %v831 = vadd.f32 %v805, %v830
      %832 = vmatmul.f32.gmra.mxu0 %v493
      %v833 = vpop.f32.mrf.mxu0
      %v834 = vadd.f32 %v808, %v833
      %835 = vdwg.mxu0
      %v836 = vmax.f32 %v724, 0.0
      %v837 = vmax.f32 %v828, 0.0
      %v838 = vmax.f32 %v727, 0.0
      %v839 = vmax.f32 %v831, 0.0
      %v840 = vmax.f32 %v730, 0.0
      %v841 = vmax.f32 %v834, 0.0
      %v842 = vld [vmem:[%s5] sm:$0x3]
      %v844 = vperm.slane %v842, 0
      %v845 = vperm.slane %v842, 1
      %v848 = vmul.f32 %v836, %v844
      %v849 = vmul.f32 %v837, %v845
      %v850 = vmul.f32 %v838, %v844
      %v851 = vmul.f32 %v839, %v845
      %v852 = vmul.f32 %v840, %v844
      %v853 = vmul.f32 %v841, %v845
      %v854 = vadd.f32 %v848, %v849
      %855 = vadd.xlane.f32.xlu0 %v854
      %v856 = vpop.xlane.xlu0 %855
      %v857 = vadd.f32 %v850, %v851
      %858 = vadd.xlane.f32.xlu0 %v857
      %v859 = vpop.xlane.xlu0 %858
      %v860 = vadd.f32 %v852, %v853
      %861 = vadd.xlane.f32.xlu0 %v860
      %v862 = vpop.xlane.xlu0 %861
      %s863 = sld [smem:[#allocation3]]
      %v864 = vstv %s863
      %v865 = vadd.f32 %v856, %v864
      %v866 = vadd.f32 %v859, %v864
      %v867 = vadd.f32 %v862, %v864
      %v868 = vxor.u32 %v865, 2147483648
      %v869 = vxor.u32 %v866, 2147483648
      %v870 = vxor.u32 %v867, 2147483648
      %v871 = vmul.f32 %v868, 1.442695
      %v872 = vpow.pop %v871
      %v873 = vmul.f32 %v869, 1.442695
      %v874 = vpow.pop %v873
      %v875 = vmul.f32 %v870, 1.442695
      %v876 = vpow.pop %v875
      %v877 = vadd.f32 %v872, 1.0
      %v878 = vadd.f32 %v874, 1.0
      %v879 = vadd.f32 %v876, 1.0
      %v880 = vrcp.pop %v877
      %v881 = vmul.f32 %v877, %v880
      %v882 = vsub.f32 1.0, %v881
      %v883 = vmul.f32 %v880, %v882
      %v884 = vadd.f32 %v880, %v883
      %vm885 = vweird.f32 %v877
      %vm886 = vweird.f32 %v880
      %vm887 = vmor %vm885, %vm886
      %v888 = vsel %vm887, %v880, %v884
      %v889 = vand.u32 2147483647, %v877
      %vm890 = vcmp.eq.f32.partialorder %v889, 8.507059e+37
      %v891 = vand.u32 %v877, 2147483648
      %v892 = vor.u32 1.1754944e-38, %v891
      %v893 = vsel %vm890, %v892, %v888
      %v894 = vmul.f32 1.0, %v893
      %v895 = vrcp.pop %v878
      %v896 = vmul.f32 %v878, %v895
      %v897 = vsub.f32 1.0, %v896
      %v898 = vmul.f32 %v895, %v897
      %v899 = vadd.f32 %v895, %v898
      %vm900 = vweird.f32 %v878
      %vm901 = vweird.f32 %v895
      %vm902 = vmor %vm900, %vm901
      %v903 = vsel %vm902, %v895, %v899
      %v904 = vand.u32 2147483647, %v878
      %vm905 = vcmp.eq.f32.partialorder %v904, 8.507059e+37
      %v906 = vand.u32 %v878, 2147483648
      %v907 = vor.u32 1.1754944e-38, %v906
      %v908 = vsel %vm905, %v907, %v903
      %v909 = vmul.f32 1.0, %v908
      %v910 = vrcp.pop %v879
      %v911 = vmul.f32 %v879, %v910
      %v912 = vsub.f32 1.0, %v911
      %v913 = vmul.f32 %v910, %v912
      %v914 = vadd.f32 %v910, %v913
      %vm915 = vweird.f32 %v879
      %vm916 = vweird.f32 %v910
      %vm917 = vmor %vm915, %vm916
      %v918 = vsel %vm917, %v910, %v914
      %v919 = vand.u32 2147483647, %v879
      %vm920 = vcmp.eq.f32.partialorder %v919, 8.507059e+37
      %v921 = vand.u32 %v879, 2147483648
      %v922 = vor.u32 1.1754944e-38, %v921
      %v923 = vsel %vm920, %v922, %v918
      %v924 = vmul.f32 1.0, %v923
      %v928 = vlaneseq
      %v929 = vand.u32 %v928, 127
      %v930 = vperm.slane %v894, %v929
      %v931 = vadd.s32 %v929, 4294967288
      %v932 = vperm.slane %v909, %v931
      %vm933 = vcmask 130112
      %v934 = vsel %vm933, %v932, %v930
      %v935 = vadd.s32 %v929, 4294967280
      %v936 = vperm.slane %v924, %v935
      %vm937 = vcmask 195712
      %v938 = vsel %vm937, %v936, %v934
      %vm940 = vcmask 188416
      %941 = vst.msk [vmem:[#allocation12] sm:$0x1] %vm940, %v938
    $region53: #{tpu_custom_call.1} parent=1 // pred_fallthru
      _
    // Predicated region
    $region54: #{tpu_custom_call.1} parent=1 // pred_check
      _
    $region55: #{tpu_custom_call.1} parent=1 // pred_check_branch
      %943 = sbr.rel (0) target = $region57
    $region56: #{tpu_custom_call.1} parent=1 // pred_region
      %945 = vsyncadd [#allocation6], 0
      %s947 = sshll.u32 [#allocation12], 4
      %s948 = int_to_ptr.vmem [resolvable:$true] %s947
      %s949 = sshll.u32 %s7, 4
      %s950 = int_to_ptr.hbm [resolvable:$true] %s949
      %952 = dma.vmem_to_hbm [thread:$0]  %s948, 16, %s950, [#allocation6]
    $region57: #{tpu_custom_call.1} parent=1 // pred_fallthru
      _
    // Predicated region
    $region58: #{tpu_custom_call.1} parent=1 // pred_check
      _
    $region59: #{tpu_custom_call.1} parent=1 // pred_check_branch
      %954 = sbr.rel (0) target = $region61
    $region60: #{tpu_custom_call.1} parent=1 // pred_region
      %956 = dma.done [#allocation6], 16
    $region61: #{tpu_custom_call.1} parent=1 // pred_fallthru
      _
    %957 = vsyncpa [#allocation5], 1
    %958 = vsyncpa [#allocation8], 1
    %959 = vsyncpa [#allocation11], 1
    %960 = vsyncpa [#allocation6], 1

</llo_original>
